<compile_context>
chip_gen: v6e
topology: v6e:2x2x1
jax: 0.10.0
libtpu: 0.0.40
codegen_flags: <defaults>
</compile_context>

<pallas_src>
import jax
import jax.numpy as jnp
from jax.experimental import pallas as pl
from jax.experimental.pallas import tpu as pltpu


def _pick_tile(dim, target, align):
    """Largest t <= target with t % align == 0 and dim % t == 0, else full dim.

    A tile smaller than the full dim must respect the (8, 128) layout rule;
    returning the full dim is always legal.
    """
    if dim <= target:
        return dim
    t = (target // align) * align
    while t >= align:
        if dim % t == 0:
            return t
        t -= align
    return dim


def _gram_kernel(ci_ref, cj_ref, xi_ref, xj_ref, o_ref, acc_ref):
    """One (tc, tc) Gram tile, accumulated over the HW reduction axis.

    xi_ref / xj_ref: (tc, tk) row-tiles of X_b (same array, C offsets ci/cj).
    o_ref: (tc, tc) output tile.  acc_ref: f32 VMEM accumulator scratch.
    """
    k = pl.program_id(2)

    @pl.when(k == 0)
    def _():
        acc_ref[...] = jnp.zeros_like(acc_ref)

    # Contract the HW (last) axis of both operands directly on the MXU: no
    # transpose is materialized, inputs stay in their native dtype (bf16 goes
    # to the MXU at full rate), accumulation is f32.
    acc_ref[...] += jax.lax.dot_general(
        xi_ref[...],
        xj_ref[...],
        dimension_numbers=(((1,), (1,)), ((), ())),
        preferred_element_type=jnp.float32,
    )

    @pl.when(k == pl.num_programs(2) - 1)
    def _():
        o_ref[...] = acc_ref[...].astype(o_ref.dtype)


@jax.jit
def gram_matrix(x):
    """x: (B, C, H, W) -> (B, C, C) float32 Gram matrices G[b] = X_b X_b^T."""
    B, C, H, W = x.shape
    HW = H * W
    x_flat = x.reshape(B, C, HW)

    # Square C-tiles (output tiles are tc x tc) and a reduction tile along HW.
    tc = _pick_tile(C, 256, 128)   # lane-dense, MXU-friendly output tiles
    tk = _pick_tile(HW, 512, 128)  # reduction depth per grid step
    n_c = C // tc
    n_k = HW // tk

    # Upper-triangle tile pairs (ci <= cj): Gram symmetry skips ~half the work.
    pairs = [(i, j) for i in range(n_c) for j in range(i, n_c)]
    ci = jnp.asarray([p[0] for p in pairs], dtype=jnp.int32)
    cj = jnp.asarray([p[1] for p in pairs], dtype=jnp.int32)
    n_pairs = len(pairs)

    itemsize = x_flat.dtype.itemsize
    cost = pl.CostEstimate(
        flops=2 * B * n_pairs * tc * tc * HW,
        transcendentals=0,
        bytes_accessed=2 * B * n_pairs * tc * HW * itemsize
        + B * n_pairs * tc * tc * 4,
    )

    out = pl.pallas_call(
        _gram_kernel,
        out_shape=jax.ShapeDtypeStruct((B, C, C), jnp.float32),
        grid_spec=pltpu.PrefetchScalarGridSpec(
            num_scalar_prefetch=2,
            grid=(B, n_pairs, n_k),
            in_specs=[
                # Row tile ci[p] of X_b -> kernel sees (tc, tk); batch squeezed.
                pl.BlockSpec(
                    (None, tc, tk), lambda b, p, k, ci_r, cj_r: (b, ci_r[p], k)
                ),
                # Row tile cj[p] of X_b -> (tc, tk).
                pl.BlockSpec(
                    (None, tc, tk), lambda b, p, k, ci_r, cj_r: (b, cj_r[p], k)
                ),
            ],
            out_specs=pl.BlockSpec(
                (None, tc, tc), lambda b, p, k, ci_r, cj_r: (b, ci_r[p], cj_r[p])
            ),
            scratch_shapes=[pltpu.VMEM((tc, tc), jnp.float32)],
        ),
        compiler_params=pltpu.CompilerParams(
            dimension_semantics=("parallel", "parallel", "arbitrary"),
            vmem_limit_bytes=32 * 1024 * 1024,
        ),
        cost_estimate=cost,
    )(ci, cj, x_flat, x_flat)

    if n_c > 1:
        # Mirror the strict lower triangle from the computed upper triangle.
        r = jnp.arange(C)
        upper = r[:, None] <= r[None, :]
        out = jnp.where(upper, out, jnp.swapaxes(out, -1, -2))
    return out


if __name__ == "__main__":
    key = jax.random.PRNGKey(0)

    # Small shapes consistent with the module's forward (B, C, H, W).
    B, C, H, W = 2, 4, 16, 16
    x = jax.random.normal(key, (B, C, H, W), dtype=jnp.float32)

    out = gram_matrix(x)
    out = jax.block_until_ready(out)

    x_flat = x.reshape(B, C, H * W)
    ref = jnp.einsum("bck,bdk->bcd", x_flat, x_flat)
    assert out.shape == (B, C, C)
    assert out.dtype == jnp.float32
    assert jnp.allclose(out, ref, atol=1e-4, rtol=1e-4)

    # Extra small check that exercises the multi-tile / symmetry-mirror path
    # (C=512 -> 2x2 C-tile grid, 3 upper-triangle tile pairs).
    B2, C2, H2, W2 = 1, 512, 8, 8
    x2 = jax.random.normal(jax.random.PRNGKey(1), (B2, C2, H2, W2), jnp.float32)
    out2 = jax.block_until_ready(gram_matrix(x2))
    x2_flat = x2.reshape(B2, C2, H2 * W2)
    ref2 = jnp.einsum("bck,bdk->bcd", x2_flat, x2_flat)
    assert jnp.allclose(out2, ref2, atol=1e-3, rtol=1e-4)

    print("KERNEL_OK")
</pallas_src>

<mosaic_0001>
module attributes {stable_mosaic.version = 11 : i64} {
  func.func @_gram_kernel(%arg0: i32, %arg1: i32, %arg2: i32, %arg3: memref<1xi32, #tpu.memory_space<smem>>, %arg4: memref<1xi32, #tpu.memory_space<smem>>, %arg5: memref<1x4x256xf32, #tpu.memory_space<vmem>>, %arg6: memref<1x4x256xf32, #tpu.memory_space<vmem>>, %arg7: memref<1x4x4xf32, #tpu.memory_space<vmem>>, %arg8: memref<4x4xf32, #tpu.memory_space<vmem>>) attributes {dimension_semantics = [#tpu.dimension_semantics<parallel>, #tpu.dimension_semantics<parallel>, #tpu.dimension_semantics<arbitrary>], iteration_bounds = array<i64: 2, 1, 1>, scalar_prefetch = 2 : i64, scratch_operands = 1 : i64, tpu.core_type = #tpu.core_type<tc>, window_params = [{transform_indices = @transform_0, window_bounds = array<i64: 1, 4, 256>}, {transform_indices = @transform_1, window_bounds = array<i64: 1, 4, 256>}, {transform_indices = @transform_2, window_bounds = array<i64: 1, 4, 4>}]} {
    %c0_i32 = arith.constant 0 : i32
    %0 = arith.cmpi eq, %arg2, %c0_i32 : i32
    %1 = arith.extui %0 : i1 to i32
    %c0_i32_0 = arith.constant 0 : i32
    %2 = arith.cmpi ne, %1, %c0_i32_0 : i32
    scf.if %2 {
      %cst_12 = arith.constant 0.000000e+00 : f32
      %14 = vector.broadcast %cst_12 : f32 to vector<4x4xf32>
      %c0_13 = arith.constant 0 : index
      %c0_14 = arith.constant 0 : index
      %15 = vector.load %arg8[%c0_13, %c0_14] : memref<4x4xf32, #tpu.memory_space<vmem>>, vector<4x4xf32>
      tpu.vector_store %arg8[%c0_13, %c0_14], %14 {strides = array<i32>} : memref<4x4xf32, #tpu.memory_space<vmem>>, vector<4x4xf32>,
    } else {
    }
    %c0 = arith.constant 0 : index
    %c0_1 = arith.constant 0 : index
    %3 = vector.load %arg8[%c0, %c0_1] : memref<4x4xf32, #tpu.memory_space<vmem>>, vector<4x4xf32>
    %c0_2 = arith.constant 0 : index
    %c0_3 = arith.constant 0 : index
    %c0_4 = arith.constant 0 : index
    %4 = vector.load %arg5[%c0_2, %c0_3, %c0_4] : memref<1x4x256xf32, #tpu.memory_space<vmem>>, vector<1x4x256xf32>
    %5 = vector.shape_cast %4 : vector<1x4x256xf32> to vector<4x256xf32>
    %c0_5 = arith.constant 0 : index
    %c0_6 = arith.constant 0 : index
    %c0_7 = arith.constant 0 : index
    %6 = vector.load %arg6[%c0_5, %c0_6, %c0_7] : memref<1x4x256xf32, #tpu.memory_space<vmem>>, vector<1x4x256xf32>
    %7 = vector.shape_cast %6 : vector<1x4x256xf32> to vector<4x256xf32>
    %cst = arith.constant dense<0.000000e+00> : vector<4x4xf32>
    %8 = tpu.matmul %5, %7, %cst {dimension_numbers = #tpu.dot_dimension_numbers<[1], [1], [0], [0], [0, 0, 1, 0], [], []>} : vector<4x256xf32>, vector<4x256xf32>, vector<4x4xf32> -> vector<4x4xf32>
    %9 = arith.addf %3, %8 : vector<4x4xf32>
    %c0_8 = arith.constant 0 : index
    %c0_9 = arith.constant 0 : index
    %10 = vector.load %arg8[%c0_8, %c0_9] : memref<4x4xf32, #tpu.memory_space<vmem>>, vector<4x4xf32>
    tpu.vector_store %arg8[%c0_8, %c0_9], %9 {strides = array<i32>} : memref<4x4xf32, #tpu.memory_space<vmem>>, vector<4x4xf32>,
    %c0_i32_10 = arith.constant 0 : i32
    %11 = arith.cmpi eq, %arg2, %c0_i32_10 : i32
    %12 = arith.extui %11 : i1 to i32
    %c0_i32_11 = arith.constant 0 : i32
    %13 = arith.cmpi ne, %12, %c0_i32_11 : i32
    scf.if %13 {
      %c0_12 = arith.constant 0 : index
      %c0_13 = arith.constant 0 : index
      %14 = vector.load %arg8[%c0_12, %c0_13] : memref<4x4xf32, #tpu.memory_space<vmem>>, vector<4x4xf32>
      %c0_14 = arith.constant 0 : index
      %c0_15 = arith.constant 0 : index
      %c0_16 = arith.constant 0 : index
      %15 = vector.load %arg7[%c0_14, %c0_15, %c0_16] : memref<1x4x4xf32, #tpu.memory_space<vmem>>, vector<1x4x4xf32>
      %16 = vector.shape_cast %15 : vector<1x4x4xf32> to vector<4x4xf32>
      %17 = vector.shape_cast %14 : vector<4x4xf32> to vector<1x4x4xf32>
      tpu.vector_store %arg7[%c0_14, %c0_15, %c0_16], %17 {strides = array<i32>} : memref<1x4x4xf32, #tpu.memory_space<vmem>>, vector<1x4x4xf32>,
    } else {
    }
    return
  }
  func.func @transform_0(%arg0: i32, %arg1: i32, %arg2: i32, %arg3: memref<1xi32, #tpu.memory_space<smem>>, %arg4: memref<1xi32, #tpu.memory_space<smem>>) -> (i32, i32, i32) {
    %0 = arith.index_cast %arg1 : i32 to index
    %1 = memref.load %arg3[%0] : memref<1xi32, #tpu.memory_space<smem>>
    %c0_i32 = arith.constant 0 : i32
    return %arg0, %1, %arg2 : i32, i32, i32
  }
  func.func @transform_1(%arg0: i32, %arg1: i32, %arg2: i32, %arg3: memref<1xi32, #tpu.memory_space<smem>>, %arg4: memref<1xi32, #tpu.memory_space<smem>>) -> (i32, i32, i32) {
    %0 = arith.index_cast %arg1 : i32 to index
    %1 = memref.load %arg4[%0] : memref<1xi32, #tpu.memory_space<smem>>
    %c0_i32 = arith.constant 0 : i32
    return %arg0, %1, %arg2 : i32, i32, i32
  }
  func.func @transform_2(%arg0: i32, %arg1: i32, %arg2: i32, %arg3: memref<1xi32, #tpu.memory_space<smem>>, %arg4: memref<1xi32, #tpu.memory_space<smem>>) -> (i32, i32, i32) {
    %0 = arith.index_cast %arg1 : i32 to index
    %1 = memref.load %arg3[%0] : memref<1xi32, #tpu.memory_space<smem>>
    %2 = arith.index_cast %arg1 : i32 to index
    %3 = memref.load %arg4[%2] : memref<1xi32, #tpu.memory_space<smem>>
    %c0_i32 = arith.constant 0 : i32
    return %arg0, %1, %3 : i32, i32, i32
  }
}

</mosaic_0001>

<llo_original>
// kernel: gram_matrix.1
$region0: #{gram_matrix.1}
  #allocation0 [shape = 'u32[]', space=smem, size = 0x4, offset = 0x4, fixed_abs, tag = 'smem constant byte address 0x4 - core index']
  #allocation1 [shape = 'u32[144,128]{1,0:T(1,128)}', space=vmem, size = 0x12000, scoped, tag = 'internal scratch']
  #allocation2 [shape = 'f32[4,4]{1,0:T(4,128)}', space=vmem, size = 0x800, scoped, tag = 'scratch operand']
  #allocation3 [shape = 's32[1]{0}', space=sflag, size = 0x4, scoped, tag = 'scoped memory for gram_matrix.1']
  #allocation4 [shape = 's32[1]{0:T(128)S(6)}', space=smem, size = 0x200, scoped, tag = 'prefetched SMEM operand 0']
  #allocation5 [shape = 's32[1]{0:T(128)S(6)}', space=smem, size = 0x200, scoped, tag = 'prefetched SMEM operand 1']
  %s0 = inlined_call_operand.<no memory space> [shape: s32[1], index: 0, kind: input, shape index: {}, may-alias: {0,1}]
  %s1 = inlined_call_operand.<no memory space> [shape: s32[1], index: 1, kind: input, shape index: {}, may-alias: {0,1}]
  %s2 = inlined_call_operand.vmem [shape: f32[2,4,256], index: 2, kind: input, shape index: {}, may-alias: {2,3}]
  %s3 = inlined_call_operand.vmem [shape: f32[2,4,256], index: 3, kind: input, shape index: {}, may-alias: {2,3}]
  %s4 = inlined_call_operand.hbm [shape: f32[2,4,4], index: 4, kind: output, shape index: {}]
  %s5 = sld [smem:[#allocation0]]
  $region49: #{gram_matrix.1} parent=0
    _
  %s7 = ssub.s32 1, %s5
  %s8 = scalar_select 0, %s7, %s5
  %9 = sst [smem:[#allocation4]] %s0
  %10 = sst [smem:[#allocation5]] %s1
  $region1: #{gram_matrix.1} parent=0
    #allocation6 [shape = 'u8[4096]{0}', space=vmem, size = 0x1000, scoped, tag = 'output window, operand 0']
    #allocation7 [shape = 's32[2]{0}', space=sflag, size = 0x8, scoped, tag = 'scoped memory for gram_matrix.1']
    %11 = vsyncpa [#allocation7], 0
    %s12 = scalar_lea.sflag [#allocation7], 1
    %13 = vsyncpa %s12, 0
    loop: start=0, step=1, limit=4
    $region2: #{gram_matrix.1} parent=1 // loop_pre_header
      _
    $region3: #{gram_matrix.1} parent=1 // loop_header
      %s15 = sphi 0, %s19
      %p16 = scmp.ge.s32.totalorder %s15, 4
      %s22 = sphi 0, %s41
      %s23 = sphi 0, %s37
      %s24 = sphi 0, %s33
      %s25 = sphi 0, %s22
      %s26 = sphi 0, %s23
      %s27 = sphi 0, %s24
      %s28 = sphi 0, %s25
      %s29 = sphi 0, %s26
      %s30 = sphi 0, %s27
      %s50 = sphi 0, %s52
      %s53 = sphi 0, %s50
      %s54 = sphi 0, %s53
      %s70 = sphi 0, %s54
      %s82 = sphi 0, %s84
      %s85 = sphi 0, %s82
      %s86 = sphi 0, %s85
      %s102 = sphi 0, %s86
      %s116 = sphi 0, %s118
      %s119 = sphi 0, %s116
      %s120 = sphi 0, %s119
      %s136 = sphi 0, %s120
    $region4: #{gram_matrix.1} parent=1 // loop_header_branch
      %18 = sbr.rel (%p16) target = $region8
    $region5: #{gram_matrix.1} parent=1 // loop_body
      %s20 = ssub.s32 %s15, 1
      %s21 = ssub.s32 %s15, 2
      %s31 = sadd.s32 1, %s24
      %p32 = scmp.ge.s32.totalorder %s31, 1
      %s33 = scalar_select %p32, 0, %s31
      %s34 = sadd.s32 1, %s23
      %s35 = scalar_select %p32, %s34, %s23
      %p36 = scmp.ge.s32.totalorder %s35, 1
      %s37 = scalar_select %p36, 0, %s35
      %s38 = sadd.s32 1, %s22
      %s39 = scalar_select %p36, %s38, %s22
      %p40 = scmp.ge.s32.totalorder %s39, 2
      %s41 = scalar_select %p40, 0, %s39
      %s42 = sld [smem:[#allocation4 + %s23]]
      %s43 = sld [smem:[#allocation4 + %s37]]
      %s44 = ssub.s32 %s22, %s41
      %s45 = ssub.s32 %s42, %s43
      %s46 = sor.u32 %s44, %s45
      %s47 = ssub.s32 %s24, %s33
      %s48 = sor.u32 %s46, %s47
      %p49 = scmp.eq.s32.totalorder %s48, 0
      %s51 = sadd.s32 %s50, 1
      %s52 = scalar_select %p49, %s50, %s51
      %p55 = pneg %p49
      %p56 = scmp.eq.s32.totalorder %s15, 1
      %p57 = por %p55, %p56
      %p58 = scmp.ne.s32.totalorder %s50, %s53
      %p59 = scmp.eq.s32.totalorder %s15, 0
      %p60 = por %p58, %p59
      %p61 = scmp.ne.s32.totalorder %s50, %s53
      %p62 = scmp.eq.s32.totalorder %s20, 1
      %p63 = por %p61, %p62
      %p64 = scmp.ne.s32.totalorder %s53, %s54
      %p65 = scmp.eq.s32.totalorder %s20, 0
      %p66 = por %p64, %p65
      %p67 = scmp.ne.s32.totalorder %s53, %s54
      %p68 = scmp.eq.s32.totalorder %s21, 1
      %p69 = por %p67, %p68
      %p71 = scmp.ne.s32.totalorder %s54, %s70
      %p72 = scmp.eq.s32.totalorder %s21, 0
      %p73 = por %p71, %p72
      %s74 = sld [smem:[#allocation5 + %s23]]
      %s75 = sld [smem:[#allocation5 + %s37]]
      %s76 = ssub.s32 %s22, %s41
      %s77 = ssub.s32 %s74, %s75
      %s78 = sor.u32 %s76, %s77
      %s79 = ssub.s32 %s24, %s33
      %s80 = sor.u32 %s78, %s79
      %p81 = scmp.eq.s32.totalorder %s80, 0
      %s83 = sadd.s32 %s82, 1
      %s84 = scalar_select %p81, %s82, %s83
      %p87 = pneg %p81
      %p88 = scmp.eq.s32.totalorder %s15, 1
      %p89 = por %p87, %p88
      %p90 = scmp.ne.s32.totalorder %s82, %s85
      %p91 = scmp.eq.s32.totalorder %s15, 0
      %p92 = por %p90, %p91
      %p93 = scmp.ne.s32.totalorder %s82, %s85
      %p94 = scmp.eq.s32.totalorder %s20, 1
      %p95 = por %p93, %p94
      %p96 = scmp.ne.s32.totalorder %s85, %s86
      %p97 = scmp.eq.s32.totalorder %s20, 0
      %p98 = por %p96, %p97
      %p99 = scmp.ne.s32.totalorder %s85, %s86
      %p100 = scmp.eq.s32.totalorder %s21, 1
      %p101 = por %p99, %p100
      %p103 = scmp.ne.s32.totalorder %s86, %s102
      %p104 = scmp.eq.s32.totalorder %s21, 0
      %p105 = por %p103, %p104
      %s106 = sld [smem:[#allocation4 + %s23]]
      %s107 = sld [smem:[#allocation5 + %s23]]
      %s108 = sld [smem:[#allocation4 + %s37]]
      %s109 = sld [smem:[#allocation5 + %s37]]
      %s110 = ssub.s32 %s22, %s41
      %s111 = ssub.s32 %s106, %s108
      %s112 = sor.u32 %s110, %s111
      %s113 = ssub.s32 %s107, %s109
      %s114 = sor.u32 %s112, %s113
      %p115 = scmp.eq.s32.totalorder %s114, 0
      %s117 = sadd.s32 %s116, 1
      %s118 = scalar_select %p115, %s116, %s117
      %p121 = pneg %p115
      %p122 = scmp.eq.s32.totalorder %s15, 1
      %p123 = por %p121, %p122
      %p124 = scmp.ne.s32.totalorder %s116, %s119
      %p125 = scmp.eq.s32.totalorder %s15, 0
      %p126 = por %p124, %p125
      %p127 = scmp.ne.s32.totalorder %s116, %s119
      %p128 = scmp.eq.s32.totalorder %s20, 1
      %p129 = por %p127, %p128
      %p130 = scmp.ne.s32.totalorder %s119, %s120
      %p131 = scmp.eq.s32.totalorder %s20, 0
      %p132 = por %p130, %p131
      %p133 = scmp.ne.s32.totalorder %s119, %s120
      %p134 = scmp.eq.s32.totalorder %s21, 1
      %p135 = por %p133, %p134
      %p137 = scmp.ne.s32.totalorder %s120, %s136
      %p138 = scmp.eq.s32.totalorder %s21, 0
      %p139 = por %p137, %p138
      %p140 = scmp.le.s32.totalorder 1, %s15
      %p141 = scmp.lt.s32.totalorder %s15, 3
      %p142 = pnand %p140, %p141
      %p143 = pneg %p142
      // Predicated region
      $region9: #{gram_matrix.1} parent=5 // pred_check
        _
      $region10: #{gram_matrix.1} parent=5 // pred_check_branch
        %145 = sbr.rel (%p142) target = $region12
      $region11: #{gram_matrix.1} parent=5 // pred_region
        %s146 = ssub.s32 %s15, 1
      $region12: #{gram_matrix.1} parent=5 // pred_fallthru
        _
      %p147 = scmp.lt.s32.totalorder %s15, 2
      // Predicated region
      $region13: #{gram_matrix.1} parent=5 // pred_check
        %p148 = pneg %p147
      $region14: #{gram_matrix.1} parent=5 // pred_check_branch
        %150 = sbr.rel (%p148) target = $region16
      $region15: #{gram_matrix.1} parent=5 // pred_region
        // Predicated region
        $region17: #{gram_matrix.1} parent=15 // pred_check
          %p151 = pneg %p60
        $region18: #{gram_matrix.1} parent=15 // pred_check_branch
          %153 = sbr.rel (%p151) target = $region20
        $region19: #{gram_matrix.1} parent=15 // pred_region
          %s154 = sld [smem:[#allocation4 + %s23]]
          %s155 = smul.u32 2, %s24
          %p156 = scmp.lt.s32.totalorder %s22, 1
          %s157 = scalar_select %p156, %s22, 1
          %p158 = scmp.lt.s32.totalorder %s154, 0
          %s159 = scalar_select %p158, %s154, 0
          %p160 = scmp.lt.s32.totalorder %s155, 1
          %s161 = scalar_select %p160, %s155, 1
          %s162 = smul.addr %s159, 2
          %s163 = sadd.s32 %s161, %s162
          %s164 = smul.addr %s157, 2
          %s165 = sadd.s32 %s163, %s164
          %s166 = smul.addr %s165, 4
          %s167 = scalar_lea.vmem %s2, %s166
          %s168 = sld [smem:[#allocation4 + %s23]]
          %s169 = smul.u32 2, %s24
        $region20: #{gram_matrix.1} parent=15 // pred_fallthru
          _
        // Predicated region
        $region21: #{gram_matrix.1} parent=15 // pred_check
          %p170 = pneg %p92
        $region22: #{gram_matrix.1} parent=15 // pred_check_branch
          %172 = sbr.rel (%p170) target = $region24
        $region23: #{gram_matrix.1} parent=15 // pred_region
          %s173 = sld [smem:[#allocation5 + %s23]]
          %s174 = smul.u32 2, %s24
          %p175 = scmp.lt.s32.totalorder %s22, 1
          %s176 = scalar_select %p175, %s22, 1
          %p177 = scmp.lt.s32.totalorder %s173, 0
          %s178 = scalar_select %p177, %s173, 0
          %p179 = scmp.lt.s32.totalorder %s174, 1
          %s180 = scalar_select %p179, %s174, 1
          %s181 = smul.addr %s178, 2
          %s182 = sadd.s32 %s180, %s181
          %s183 = smul.addr %s176, 2
          %s184 = sadd.s32 %s182, %s183
          %s185 = smul.addr %s184, 4
          %s186 = scalar_lea.vmem %s3, %s185
          %s187 = sld [smem:[#allocation5 + %s23]]
          %s188 = smul.u32 2, %s24
        $region24: #{gram_matrix.1} parent=15 // pred_fallthru
          _
      $region16: #{gram_matrix.1} parent=5 // pred_fallthru
        _
      %p189 = scmp.le.s32.totalorder 1, %s15
      %p190 = scmp.lt.s32.totalorder %s15, 3
      %p191 = pnand %p189, %p190
      %p192 = pneg %p191
      // Predicated region
      $region25: #{gram_matrix.1} parent=5 // pred_check
        _
      $region26: #{gram_matrix.1} parent=5 // pred_check_branch
        %194 = sbr.rel (%p191) target = $region28
      $region27: #{gram_matrix.1} parent=5 // pred_region
        %s195 = ssub.s32 %s15, 1
        %s196 = sld [smem:[#allocation4 + %s26]]
        %s197 = smul.u32 2, %s27
        %p198 = scmp.lt.s32.totalorder %s25, 1
        %s199 = scalar_select %p198, %s25, 1
        %p200 = scmp.lt.s32.totalorder %s196, 0
        %s201 = scalar_select %p200, %s196, 0
        %p202 = scmp.lt.s32.totalorder %s197, 1
        %s203 = scalar_select %p202, %s197, 1
        %s204 = smul.addr %s201, 2
        %s205 = sadd.s32 %s203, %s204
        %s206 = smul.addr %s199, 2
        %s207 = sadd.s32 %s205, %s206
        %s208 = smul.addr %s207, 4
        %s209 = scalar_lea.vmem %s2, %s208
        %p210 = pneg %p66
        %p211 = pneg %p63
        %s212 = sld [smem:[#allocation5 + %s26]]
        %s213 = smul.u32 2, %s27
        %p214 = scmp.lt.s32.totalorder %s25, 1
        %s215 = scalar_select %p214, %s25, 1
        %p216 = scmp.lt.s32.totalorder %s212, 0
        %s217 = scalar_select %p216, %s212, 0
        %p218 = scmp.lt.s32.totalorder %s213, 1
        %s219 = scalar_select %p218, %s213, 1
        %s220 = smul.addr %s217, 2
        %s221 = sadd.s32 %s219, %s220
        %s222 = smul.addr %s215, 2
        %s223 = sadd.s32 %s221, %s222
        %s224 = smul.addr %s223, 4
        %s225 = scalar_lea.vmem %s3, %s224
        %p226 = pneg %p98
        %p227 = pneg %p95
        %p228 = pneg %p132
        %p229 = pneg %p129
        %s230 = sand.u32 %s119, 1
        %s231 = scalar_lea.sflag [#allocation7], %s230
        %s232 = sand.u32 %s119, 1
        %s233 = smul.addr %s232, 4
        %s234 = scalar_lea.vmem [#allocation6], %s233
        %s235 = sld [smem:[#allocation4 + %s26]]
        %s236 = smul.u32 2, %s27
        %p237 = scmp.lt.s32.totalorder %s25, 1
        %s238 = scalar_select %p237, %s25, 1
        %p239 = scmp.lt.s32.totalorder %s235, 0
        %s240 = scalar_select %p239, %s235, 0
        %p241 = scmp.lt.s32.totalorder %s236, 1
        %s242 = scalar_select %p241, %s236, 1
        %s243 = smul.addr %s240, 2
        %s244 = sadd.s32 %s242, %s243
        %s245 = smul.addr %s238, 2
        %s246 = sadd.s32 %s244, %s245
        %s247 = smul.addr %s246, 4
        %s248 = scalar_lea.vmem %s2, %s247
        %s249 = sld [smem:[#allocation4 + %s26]]
        %s250 = smul.u32 2, %s27
        %s251 = sld [smem:[#allocation5 + %s26]]
        %s252 = smul.u32 2, %s27
        %p253 = scmp.lt.s32.totalorder %s25, 1
        %s254 = scalar_select %p253, %s25, 1
        %p255 = scmp.lt.s32.totalorder %s251, 0
        %s256 = scalar_select %p255, %s251, 0
        %p257 = scmp.lt.s32.totalorder %s252, 1
        %s258 = scalar_select %p257, %s252, 1
        %s259 = smul.addr %s256, 2
        %s260 = sadd.s32 %s258, %s259
        %s261 = smul.addr %s254, 2
        %s262 = sadd.s32 %s260, %s261
        %s263 = smul.addr %s262, 4
        %s264 = scalar_lea.vmem %s3, %s263
        %s265 = sld [smem:[#allocation5 + %s26]]
        %s266 = smul.u32 2, %s27
        %s267 = sld [smem:[#allocation4 + %s26]]
        %s268 = sld [smem:[#allocation5 + %s26]]
        %p269 = scmp.eq.s32.totalorder %s27, 0
        // Predicated region
        $region29: #{gram_matrix.1} parent=27 // pred_check
          %p270 = pneg %p269
        $region30: #{gram_matrix.1} parent=27 // pred_check_branch
          %272 = sbr.rel (%p270) target = $region32
        $region31: #{gram_matrix.1} parent=27 // pred_region
          %vm273 = vcmask 27648
          %274 = vst.msk [vmem:[#allocation2] sm:$0xf] %vm273, 0.0
        $region32: #{gram_matrix.1} parent=27 // pred_fallthru
          _
        %v275 = vld [vmem:[#allocation2] sm:$0xf]
        %v276 = vld [vmem:[%s248] sm:$0xff]
        %v277 = vld [vmem:[%s264] sm:$0xff]
        %v279 = vcombine.high %v276, %v276
        %v282 = vcombine.high %v277, %v277
        %284 = vmatprep.subr.mxu0 0.0
        %285 = vmatpush1.xpose.msra.mxu0 0.0
        %286 = vmatprep.subr.mxu0 0.0
        %287 = vmatpush1.xpose.msra.mxu0 0.0
        %288 = vmatprep.subr.mxu0 0.0
        %289 = vmatpush1.xpose.msra.mxu0 0.0
        %290 = vmatprep.subr.mxu0 0.0
        %291 = vmatpush1.xpose.msra.mxu0 0.0
        %292 = vmatprep.subr.mxu0 0.0
        %293 = vmatpush1.xpose.msra.mxu0 0.0
        %294 = vmatprep.subr.mxu0 0.0
        %295 = vmatpush1.xpose.msra.mxu0 0.0
        %296 = vmatprep.subr.mxu0 0.0
        %297 = vmatpush1.xpose.msra.mxu0 0.0
        %298 = vmatprep.subr.mxu0 0.0
        %299 = vmatpush1.xpose.msra.mxu0 0.0
        %300 = vmatprep.subr.mxu0 0.0
        %301 = vmatpush1.xpose.msra.mxu0 0.0
        %302 = vmatprep.subr.mxu0 0.0
        %303 = vmatpush1.xpose.msra.mxu0 0.0
        %304 = vmatprep.subr.mxu0 0.0
        %305 = vmatpush1.xpose.msra.mxu0 0.0
        %306 = vmatprep.subr.mxu0 0.0
        %307 = vmatpush1.xpose.msra.mxu0 0.0
        %308 = vmatprep.subr.mxu0 0.0
        %309 = vmatpush1.xpose.msra.mxu0 0.0
        %310 = vmatprep.subr.mxu0 0.0
        %311 = vmatpush1.xpose.msra.mxu0 0.0
        %312 = vmatprep.subr.mxu0 0.0
        %313 = vmatpush1.xpose.msra.mxu0 0.0
        %314 = vmatprep.subr.mxu0 %v282
        %315 = vmatpush1.xpose.msra.mxu0 %v277
        %316 = vmatprep.subr.mxu0 0.0
        %317 = vmatpush2.xpose.msra.mxu0 0.0
        %318 = vmatprep.subr.mxu0 0.0
        %319 = vmatpush2.xpose.msra.mxu0 0.0
        %320 = vmatprep.subr.mxu0 0.0
        %321 = vmatpush2.xpose.msra.mxu0 0.0
        %322 = vmatprep.subr.mxu0 0.0
        %323 = vmatpush2.xpose.msra.mxu0 0.0
        %324 = vmatprep.subr.mxu0 0.0
        %325 = vmatpush2.xpose.msra.mxu0 0.0
        %326 = vmatprep.subr.mxu0 0.0
        %327 = vmatpush2.xpose.msra.mxu0 0.0
        %328 = vmatprep.subr.mxu0 0.0
        %329 = vmatpush2.xpose.msra.mxu0 0.0
        %330 = vmatprep.subr.mxu0 0.0
        %331 = vmatpush2.xpose.msra.mxu0 0.0
        %332 = vmatprep.subr.mxu0 0.0
        %333 = vmatpush2.xpose.msra.mxu0 0.0
        %334 = vmatprep.subr.mxu0 0.0
        %335 = vmatpush2.xpose.msra.mxu0 0.0
        %336 = vmatprep.subr.mxu0 0.0
        %337 = vmatpush2.xpose.msra.mxu0 0.0
        %338 = vmatprep.subr.mxu0 0.0
        %339 = vmatpush2.xpose.msra.mxu0 0.0
        %340 = vmatprep.subr.mxu0 0.0
        %341 = vmatpush2.xpose.msra.mxu0 0.0
        %342 = vmatprep.subr.mxu0 0.0
        %343 = vmatpush2.xpose.msra.mxu0 0.0
        %344 = vmatprep.subr.mxu0 0.0
        %345 = vmatpush2.xpose.msra.mxu0 0.0
        %346 = vmatprep.subr.mxu0 0.0
        %347 = vmatpush2.xpose.msra.mxu0 0.0
        %348 = vmatprep.mubr.f32.mxu0 %v279
        %349 = vmatmul.mubr.f32.gmra.mxu0 %v276
        %v350 = vpop.f32.mrf.mxu0
        %v351 = vadd.f32 0.0, %v350
        %v352 = vpop.f32.mrf.mxu0
        %353 = vdwg.mxu0
        %v354 = vadd.f32 %v275, %v351
        %vm355 = vcmask 27648
        %356 = vst.msk [vmem:[#allocation2] sm:$0xf] %vm355, %v354
        // Predicated region
        $region33: #{gram_matrix.1} parent=27 // pred_check
          %p357 = pneg %p269
        $region34: #{gram_matrix.1} parent=27 // pred_check_branch
          %359 = sbr.rel (%p357) target = $region36
        $region35: #{gram_matrix.1} parent=27 // pred_region
          %v360 = vld [vmem:[#allocation2] sm:$0xf]
          %361 = vst.msk [vmem:[%s234] sm:$0xf] %vm355, %v360
        $region36: #{gram_matrix.1} parent=27 // pred_fallthru
          _
        %s362 = sand.u32 %s119, 1
        %s363 = scalar_lea.sflag [#allocation7], %s362
        %s364 = sand.u32 %s119, 1
        %s365 = smul.addr %s364, 4
        %s366 = scalar_lea.vmem [#allocation6], %s365
        // Predicated region
        $region37: #{gram_matrix.1} parent=27 // pred_check
          %p367 = pneg %p129
        $region38: #{gram_matrix.1} parent=27 // pred_check_branch
          %369 = sbr.rel (%p367) target = $region40
        $region39: #{gram_matrix.1} parent=27 // pred_region
          %s370 = sld [smem:[#allocation4 + %s26]]
          %s371 = sld [smem:[#allocation5 + %s26]]
          %s373 = ssub.s32 64, 64
          %374 = vsyncadd %s363, %s373
          %s375 = sadd.s32 %s371, %s370
          %s376 = sadd.s32 %s375, %s25
          %s377 = smul.addr %s376, 64
          %s378 = scalar_lea.hbm %s4, %s377
          %s380 = sshll.u32 %s366, 4
          %s381 = int_to_ptr.vmem [resolvable:$true] %s380
          %383 = dma.vmem_to_hbm [thread:$0]  %s381, 64, %s378, %s363
        $region40: #{gram_matrix.1} parent=27 // pred_fallthru
          _
      $region28: #{gram_matrix.1} parent=5 // pred_fallthru
        _
      %p384 = scmp.le.s32.totalorder 2, %s15
      // Predicated region
      $region41: #{gram_matrix.1} parent=5 // pred_check
        %p385 = pneg %p384
      $region42: #{gram_matrix.1} parent=5 // pred_check_branch
        %387 = sbr.rel (%p385) target = $region44
      $region43: #{gram_matrix.1} parent=5 // pred_region
        %s388 = ssub.s32 %s15, 2
        // Predicated region
        $region45: #{gram_matrix.1} parent=43 // pred_check
          %p389 = pneg %p135
        $region46: #{gram_matrix.1} parent=43 // pred_check_branch
          %391 = sbr.rel (%p389) target = $region48
        $region47: #{gram_matrix.1} parent=43 // pred_region
          %s392 = sand.u32 %s120, 1
          %s393 = scalar_lea.sflag [#allocation7], %s392
          %s394 = sand.u32 %s120, 1
          %s395 = smul.addr %s394, 4
          %s396 = scalar_lea.vmem [#allocation6], %s395
          %397 = dma.done %s393, 64
        $region48: #{gram_matrix.1} parent=43 // pred_fallthru
          _
      $region44: #{gram_matrix.1} parent=5 // pred_fallthru
        _
    $region6: #{gram_matrix.1} parent=1 // loop_footer
      %s19 = sadd.s32 1, %s15
    $region7: #{gram_matrix.1} parent=1 // loop_footer_branch
      %14 = sbr.rel target = $region3
    $region8: #{gram_matrix.1} parent=1 // loop_exit
      _
    %398 = vsyncpa [#allocation7], 1
    %s399 = scalar_lea.sflag [#allocation7], 1
    %400 = vsyncpa %s399, 1

</llo_original>
